<compile_context>
chip_gen: v7x
topology: tpu7x:2x2x1
jax: 0.10.0
libtpu: 0.0.40
codegen_flags: <defaults>
</compile_context>

<pallas_src>
import jax
import jax.numpy as jnp
from jax.experimental import pallas as pl
from jax.experimental.pallas import tpu as pltpu

LANE = 128   # vreg lane width
SUB = 8      # f32 vreg sublane count (layout quantum on the second-minor dim)


def _round_up(n, m):
    return ((n + m - 1) // m) * m


def _cdiv(a, b):
    return (a + b - 1) // b


def simplenet_kernel(w1_ref, b1_ref, w2_ref, b2_ref, x_ref, o_ref):
    # x_ref: [4, TILE_S, 128] f32 VMEM  (feature-major, batch on sublane+lane).
    # o_ref: [2, TILE_S, 128] f32 VMEM  (softmax probs, same batch layout).
    # w1_ref [3,4], b1_ref [3], w2_ref [2,3], b2_ref [2]: SMEM, grid-resident.
    x0 = x_ref[0]
    x1 = x_ref[1]
    x2 = x_ref[2]
    x3 = x_ref[3]

    # fc1 + ReLU fused directly into the fc2 logit difference d = z1 - z0.
    # K=4/K=3 are far too small for an MXU round trip: unrolled scalar*plane
    # FMAs on the VPU, all operands dense (TILE_S, 128) planes.
    d = None
    for j in range(3):
        h = jnp.maximum(
            x0 * w1_ref[j, 0] + x1 * w1_ref[j, 1]
            + x2 * w1_ref[j, 2] + x3 * w1_ref[j, 3] + b1_ref[j],
            0.0)                                          # (TILE_S, 128)
        wd = w2_ref[1, j] - w2_ref[0, j]                  # scalar sub in SMEM
        d = h * wd if d is None else d + h * wd
    d = d + (b2_ref[1] - b2_ref[0])                       # z1 - z0

    # Stable 2-class softmax == sigmoid of the logit difference. t in (0, 1],
    # so no overflow, and both classes keep relative accuracy. Pure elementwise
    # (one EUP exp), no cross-lane/sublane reductions.
    t = jnp.exp(-jnp.abs(d))
    inv = 1.0 / (1.0 + t)
    p_big = inv                                           # prob of larger logit
    p_small = t * inv
    pos = d >= 0.0
    # Direct full-plane (unmasked) stores; no sublane relayout.
    o_ref[0] = jnp.where(pos, p_small, p_big)             # class 0
    o_ref[1] = jnp.where(pos, p_big, p_small)             # class 1


def simplenet_forward(x, w1, b1, w2, b2, *, tile_s=None):
    """x: [B, 4] f32. Weights in PyTorch layout: w1 [3,4], b1 [3], w2 [2,3], b2 [2].

    Returns [B, 2] softmax probabilities (f32).
    """
    B = x.shape[0]
    # Batch -> (sublane, lane): S rows of 128 lanes, padded only to the
    # 8-sublane layout quantum (partial final grid blocks are allowed; Pallas
    # pads boundary reads and masks boundary writes).
    S = _cdiv(max(B, 1), LANE)
    S_pad = _round_up(S, SUB)
    B_pad = S_pad * LANE

    if tile_s is None:
        # ~1-2 MiB input tiles amortize the ~0.35us/grid-step overhead; the
        # double-buffered footprint (~6 MiB at tile_s=1024) stays well under
        # v5e's 16 MiB scoped-VMEM default. Prefer >=2 grid steps so the
        # "parallel" axis can shard across v7x's two TensorCores.
        cap = 1024                       # 1024 * 128 = 131072 batch elems/step
        if S_pad >= 2 * SUB:
            tile_s = min(cap, _round_up(_cdiv(S_pad, 2), SUB))
        else:
            tile_s = S_pad
    tile_s = _round_up(min(int(tile_s), S_pad), SUB)
    grid = (_cdiv(S_pad, tile_s),)

    # Feature-major planar layout [4, S_pad, 128]; batch element b sits at
    # (row b // 128, lane b % 128). Padded positions are zero -> finite garbage
    # probabilities that are sliced off below and never read.
    # TODO(synk): callers that keep activations in this planar layout end to end
    # avoid the pad/transpose HBM passes below (largest end-to-end lever).
    xT = jnp.zeros((4, B_pad), jnp.float32).at[:, :B].set(x.astype(jnp.float32).T)
    xP = xT.reshape(4, S_pad, LANE)

    smem = pl.BlockSpec(memory_space=pltpu.MemorySpace.SMEM)
    outP = pl.pallas_call(
        simplenet_kernel,
        out_shape=jax.ShapeDtypeStruct((2, S_pad, LANE), jnp.float32),
        grid=grid,
        in_specs=[
            smem,  # w1 [3,4]  -- whole array, SMEM-resident across the grid
            smem,  # b1 [3]
            smem,  # w2 [2,3]
            smem,  # b2 [2]
            pl.BlockSpec((4, tile_s, LANE), lambda i: (0, i, 0)),   # x planes
        ],
        out_specs=pl.BlockSpec((2, tile_s, LANE), lambda i: (0, i, 0)),
        compiler_params=pltpu.CompilerParams(
            dimension_semantics=("parallel",)),
    )(w1, b1, w2, b2, xP)

    return outP.reshape(2, B_pad)[:, :B].T                 # [B, 2]


def init_params(key):
    # Deterministic init mimicking nn.Linear default (uniform +/- 1/sqrt(fan_in)),
    # stored in PyTorch layout: weight [out, in], bias [out].
    k1, k2, k3, k4 = jax.random.split(key, 4)
    bound1 = 1.0 / jnp.sqrt(4.0)
    bound2 = 1.0 / jnp.sqrt(3.0)
    w1 = jax.random.uniform(k1, (3, 4), jnp.float32, -bound1, bound1)
    b1 = jax.random.uniform(k2, (3,), jnp.float32, -bound1, bound1)
    w2 = jax.random.uniform(k3, (2, 3), jnp.float32, -bound2, bound2)
    b2 = jax.random.uniform(k4, (2,), jnp.float32, -bound2, bound2)
    return w1, b1, w2, b2


def reference_forward(x, w1, b1, w2, b2):
    h = jnp.maximum(x @ w1.T + b1, 0.0)
    z = h @ w2.T + b2
    return jax.nn.softmax(z, axis=1)


if __name__ == "__main__":
    key = jax.random.PRNGKey(0)
    kx, kp = jax.random.split(key)
    w1, b1, w2, b2 = init_params(kp)

    # 1) Small batch: single 8x128 tile, grid=(1,).
    B = 8
    x = jax.random.normal(kx, (B, 4), dtype=jnp.float32)
    out = jax.block_until_ready(simplenet_forward(x, w1, b1, w2, b2))
    ref = reference_forward(x, w1, b1, w2, b2)
    assert out.shape == (B, 2)
    assert jnp.allclose(out, ref, atol=1e-5, rtol=1e-5), "mismatch vs reference (B=8)"
    assert jnp.allclose(jnp.sum(out, axis=1), 1.0, atol=1e-5), "rows must sum to 1"

    # 2) Explicit tiny tile (exercises the explicit-tile path).
    B2 = 300
    x2 = jax.random.normal(kx, (B2, 4), dtype=jnp.float32)
    out2 = jax.block_until_ready(simplenet_forward(x2, w1, b1, w2, b2, tile_s=8))
    ref2 = reference_forward(x2, w1, b1, w2, b2)
    assert out2.shape == (B2, 2)
    assert jnp.allclose(out2, ref2, atol=1e-5, rtol=1e-5), "mismatch vs reference (B=300)"

    # 3) Default tiling with multiple grid steps and a partial final block
    #    (S_pad=24, tile_s=16, grid=(2,)).
    B3 = 3000
    x3 = jax.random.normal(kx, (B3, 4), dtype=jnp.float32)
    out3 = jax.block_until_ready(simplenet_forward(x3, w1, b1, w2, b2))
    ref3 = reference_forward(x3, w1, b1, w2, b2)
    assert out3.shape == (B3, 2)
    assert jnp.allclose(out3, ref3, atol=1e-5, rtol=1e-5), "mismatch vs reference (B=3000)"

    print("KERNEL_OK")
</pallas_src>

<mosaic_0001>
module attributes {stable_mosaic.version = 11 : i64} {
  func.func @simplenet_kernel(%arg0: i32, %arg1: memref<3x4xf32, #tpu.memory_space<smem>>, %arg2: memref<3xf32, #tpu.memory_space<smem>>, %arg3: memref<2x3xf32, #tpu.memory_space<smem>>, %arg4: memref<2xf32, #tpu.memory_space<smem>>, %arg5: memref<4x8x128xf32, #tpu.memory_space<vmem>>, %arg6: memref<2x8x128xf32, #tpu.memory_space<vmem>>) attributes {dimension_semantics = [#tpu.dimension_semantics<parallel>], iteration_bounds = array<i64: 1>, scalar_prefetch = 0 : i64, scratch_operands = 0 : i64, tpu.core_type = #tpu.core_type<tc>, window_params = [{transform_indices = @transform_0, window_bounds = array<i64: 3, 4>}, {transform_indices = @transform_1, window_bounds = array<i64: 3>}, {transform_indices = @transform_2, window_bounds = array<i64: 2, 3>}, {transform_indices = @transform_3, window_bounds = array<i64: 2>}, {transform_indices = @transform_4, window_bounds = array<i64: 4, 8, 128>}, {transform_indices = @transform_5, window_bounds = array<i64: 2, 8, 128>}]} {
    %c0 = arith.constant 0 : index
    %c0_0 = arith.constant 0 : index
    %c0_1 = arith.constant 0 : index
    %0 = vector.load %arg5[%c0, %c0_0, %c0_1] : memref<4x8x128xf32, #tpu.memory_space<vmem>>, vector<1x8x128xf32>
    %1 = vector.shape_cast %0 : vector<1x8x128xf32> to vector<8x128xf32>
    %c1 = arith.constant 1 : index
    %c0_2 = arith.constant 0 : index
    %c0_3 = arith.constant 0 : index
    %2 = vector.load %arg5[%c1, %c0_2, %c0_3] : memref<4x8x128xf32, #tpu.memory_space<vmem>>, vector<1x8x128xf32>
    %3 = vector.shape_cast %2 : vector<1x8x128xf32> to vector<8x128xf32>
    %c2 = arith.constant 2 : index
    %c0_4 = arith.constant 0 : index
    %c0_5 = arith.constant 0 : index
    %4 = vector.load %arg5[%c2, %c0_4, %c0_5] : memref<4x8x128xf32, #tpu.memory_space<vmem>>, vector<1x8x128xf32>
    %5 = vector.shape_cast %4 : vector<1x8x128xf32> to vector<8x128xf32>
    %c3 = arith.constant 3 : index
    %c0_6 = arith.constant 0 : index
    %c0_7 = arith.constant 0 : index
    %6 = vector.load %arg5[%c3, %c0_6, %c0_7] : memref<4x8x128xf32, #tpu.memory_space<vmem>>, vector<1x8x128xf32>
    %7 = vector.shape_cast %6 : vector<1x8x128xf32> to vector<8x128xf32>
    %c0_8 = arith.constant 0 : index
    %c0_9 = arith.constant 0 : index
    %8 = memref.load %arg1[%c0_8, %c0_9] : memref<3x4xf32, #tpu.memory_space<smem>>
    %9 = vector.broadcast %8 : f32 to vector<8x128xf32>
    %10 = arith.mulf %1, %9 : vector<8x128xf32>
    %c0_10 = arith.constant 0 : index
    %c1_11 = arith.constant 1 : index
    %11 = memref.load %arg1[%c0_10, %c1_11] : memref<3x4xf32, #tpu.memory_space<smem>>
    %12 = vector.broadcast %11 : f32 to vector<8x128xf32>
    %13 = arith.mulf %3, %12 : vector<8x128xf32>
    %14 = arith.addf %10, %13 : vector<8x128xf32>
    %c0_12 = arith.constant 0 : index
    %c2_13 = arith.constant 2 : index
    %15 = memref.load %arg1[%c0_12, %c2_13] : memref<3x4xf32, #tpu.memory_space<smem>>
    %16 = vector.broadcast %15 : f32 to vector<8x128xf32>
    %17 = arith.mulf %5, %16 : vector<8x128xf32>
    %18 = arith.addf %14, %17 : vector<8x128xf32>
    %c0_14 = arith.constant 0 : index
    %c3_15 = arith.constant 3 : index
    %19 = memref.load %arg1[%c0_14, %c3_15] : memref<3x4xf32, #tpu.memory_space<smem>>
    %20 = vector.broadcast %19 : f32 to vector<8x128xf32>
    %21 = arith.mulf %7, %20 : vector<8x128xf32>
    %22 = arith.addf %18, %21 : vector<8x128xf32>
    %c0_16 = arith.constant 0 : index
    %23 = memref.load %arg2[%c0_16] : memref<3xf32, #tpu.memory_space<smem>>
    %24 = vector.broadcast %23 : f32 to vector<8x128xf32>
    %25 = arith.addf %22, %24 : vector<8x128xf32>
    %cst = arith.constant 0.000000e+00 : f32
    %26 = vector.broadcast %cst : f32 to vector<8x128xf32>
    %27 = arith.maximumf %25, %26 : vector<8x128xf32>
    %c1_17 = arith.constant 1 : index
    %c0_18 = arith.constant 0 : index
    %28 = memref.load %arg3[%c1_17, %c0_18] : memref<2x3xf32, #tpu.memory_space<smem>>
    %c0_19 = arith.constant 0 : index
    %c0_20 = arith.constant 0 : index
    %29 = memref.load %arg3[%c0_19, %c0_20] : memref<2x3xf32, #tpu.memory_space<smem>>
    %30 = arith.subf %28, %29 : f32
    %31 = vector.broadcast %30 : f32 to vector<8x128xf32>
    %32 = arith.mulf %27, %31 : vector<8x128xf32>
    %c1_21 = arith.constant 1 : index
    %c0_22 = arith.constant 0 : index
    %33 = memref.load %arg1[%c1_21, %c0_22] : memref<3x4xf32, #tpu.memory_space<smem>>
    %34 = vector.broadcast %33 : f32 to vector<8x128xf32>
    %35 = arith.mulf %1, %34 : vector<8x128xf32>
    %c1_23 = arith.constant 1 : index
    %c1_24 = arith.constant 1 : index
    %36 = memref.load %arg1[%c1_23, %c1_24] : memref<3x4xf32, #tpu.memory_space<smem>>
    %37 = vector.broadcast %36 : f32 to vector<8x128xf32>
    %38 = arith.mulf %3, %37 : vector<8x128xf32>
    %39 = arith.addf %35, %38 : vector<8x128xf32>
    %c1_25 = arith.constant 1 : index
    %c2_26 = arith.constant 2 : index
    %40 = memref.load %arg1[%c1_25, %c2_26] : memref<3x4xf32, #tpu.memory_space<smem>>
    %41 = vector.broadcast %40 : f32 to vector<8x128xf32>
    %42 = arith.mulf %5, %41 : vector<8x128xf32>
    %43 = arith.addf %39, %42 : vector<8x128xf32>
    %c1_27 = arith.constant 1 : index
    %c3_28 = arith.constant 3 : index
    %44 = memref.load %arg1[%c1_27, %c3_28] : memref<3x4xf32, #tpu.memory_space<smem>>
    %45 = vector.broadcast %44 : f32 to vector<8x128xf32>
    %46 = arith.mulf %7, %45 : vector<8x128xf32>
    %47 = arith.addf %43, %46 : vector<8x128xf32>
    %c1_29 = arith.constant 1 : index
    %48 = memref.load %arg2[%c1_29] : memref<3xf32, #tpu.memory_space<smem>>
    %49 = vector.broadcast %48 : f32 to vector<8x128xf32>
    %50 = arith.addf %47, %49 : vector<8x128xf32>
    %cst_30 = arith.constant 0.000000e+00 : f32
    %51 = vector.broadcast %cst_30 : f32 to vector<8x128xf32>
    %52 = arith.maximumf %50, %51 : vector<8x128xf32>
    %c1_31 = arith.constant 1 : index
    %c1_32 = arith.constant 1 : index
    %53 = memref.load %arg3[%c1_31, %c1_32] : memref<2x3xf32, #tpu.memory_space<smem>>
    %c0_33 = arith.constant 0 : index
    %c1_34 = arith.constant 1 : index
    %54 = memref.load %arg3[%c0_33, %c1_34] : memref<2x3xf32, #tpu.memory_space<smem>>
    %55 = arith.subf %53, %54 : f32
    %56 = vector.broadcast %55 : f32 to vector<8x128xf32>
    %57 = arith.mulf %52, %56 : vector<8x128xf32>
    %58 = arith.addf %32, %57 : vector<8x128xf32>
    %c2_35 = arith.constant 2 : index
    %c0_36 = arith.constant 0 : index
    %59 = memref.load %arg1[%c2_35, %c0_36] : memref<3x4xf32, #tpu.memory_space<smem>>
    %60 = vector.broadcast %59 : f32 to vector<8x128xf32>
    %61 = arith.mulf %1, %60 : vector<8x128xf32>
    %c2_37 = arith.constant 2 : index
    %c1_38 = arith.constant 1 : index
    %62 = memref.load %arg1[%c2_37, %c1_38] : memref<3x4xf32, #tpu.memory_space<smem>>
    %63 = vector.broadcast %62 : f32 to vector<8x128xf32>
    %64 = arith.mulf %3, %63 : vector<8x128xf32>
    %65 = arith.addf %61, %64 : vector<8x128xf32>
    %c2_39 = arith.constant 2 : index
    %c2_40 = arith.constant 2 : index
    %66 = memref.load %arg1[%c2_39, %c2_40] : memref<3x4xf32, #tpu.memory_space<smem>>
    %67 = vector.broadcast %66 : f32 to vector<8x128xf32>
    %68 = arith.mulf %5, %67 : vector<8x128xf32>
    %69 = arith.addf %65, %68 : vector<8x128xf32>
    %c2_41 = arith.constant 2 : index
    %c3_42 = arith.constant 3 : index
    %70 = memref.load %arg1[%c2_41, %c3_42] : memref<3x4xf32, #tpu.memory_space<smem>>
    %71 = vector.broadcast %70 : f32 to vector<8x128xf32>
    %72 = arith.mulf %7, %71 : vector<8x128xf32>
    %73 = arith.addf %69, %72 : vector<8x128xf32>
    %c2_43 = arith.constant 2 : index
    %74 = memref.load %arg2[%c2_43] : memref<3xf32, #tpu.memory_space<smem>>
    %75 = vector.broadcast %74 : f32 to vector<8x128xf32>
    %76 = arith.addf %73, %75 : vector<8x128xf32>
    %cst_44 = arith.constant 0.000000e+00 : f32
    %77 = vector.broadcast %cst_44 : f32 to vector<8x128xf32>
    %78 = arith.maximumf %76, %77 : vector<8x128xf32>
    %c1_45 = arith.constant 1 : index
    %c2_46 = arith.constant 2 : index
    %79 = memref.load %arg3[%c1_45, %c2_46] : memref<2x3xf32, #tpu.memory_space<smem>>
    %c0_47 = arith.constant 0 : index
    %c2_48 = arith.constant 2 : index
    %80 = memref.load %arg3[%c0_47, %c2_48] : memref<2x3xf32, #tpu.memory_space<smem>>
    %81 = arith.subf %79, %80 : f32
    %82 = vector.broadcast %81 : f32 to vector<8x128xf32>
    %83 = arith.mulf %78, %82 : vector<8x128xf32>
    %84 = arith.addf %58, %83 : vector<8x128xf32>
    %c1_49 = arith.constant 1 : index
    %85 = memref.load %arg4[%c1_49] : memref<2xf32, #tpu.memory_space<smem>>
    %c0_50 = arith.constant 0 : index
    %86 = memref.load %arg4[%c0_50] : memref<2xf32, #tpu.memory_space<smem>>
    %87 = arith.subf %85, %86 : f32
    %88 = vector.broadcast %87 : f32 to vector<8x128xf32>
    %89 = arith.addf %84, %88 : vector<8x128xf32>
    %90 = math.absf %89 : vector<8x128xf32>
    %cst_51 = arith.constant 0.000000e+00 : f32
    %91 = vector.broadcast %cst_51 : f32 to vector<8x128xf32>
    %92 = arith.subf %91, %90 : vector<8x128xf32>
    %93 = math.exp %92 : vector<8x128xf32>
    %cst_52 = arith.constant 1.000000e+00 : f32
    %94 = vector.broadcast %cst_52 : f32 to vector<8x128xf32>
    %95 = arith.addf %94, %93 : vector<8x128xf32>
    %cst_53 = arith.constant 1.000000e+00 : f32
    %96 = vector.broadcast %cst_53 : f32 to vector<8x128xf32>
    %97 = arith.divf %96, %95 : vector<8x128xf32>
    %98 = arith.mulf %93, %97 : vector<8x128xf32>
    %cst_54 = arith.constant 0.000000e+00 : f32
    %99 = vector.broadcast %cst_54 : f32 to vector<8x128xf32>
    %100 = arith.cmpf oge, %89, %99 : vector<8x128xf32>
    %101 = arith.select %100, %98, %97 : vector<8x128xi1>, vector<8x128xf32>
    %c0_55 = arith.constant 0 : index
    %c0_56 = arith.constant 0 : index
    %c0_57 = arith.constant 0 : index
    %102 = vector.load %arg6[%c0_55, %c0_56, %c0_57] : memref<2x8x128xf32, #tpu.memory_space<vmem>>, vector<1x8x128xf32>
    %103 = vector.shape_cast %102 : vector<1x8x128xf32> to vector<8x128xf32>
    %104 = vector.shape_cast %101 : vector<8x128xf32> to vector<1x8x128xf32>
    tpu.vector_store %arg6[%c0_55, %c0_56, %c0_57], %104 {strides = array<i32>} : memref<2x8x128xf32, #tpu.memory_space<vmem>>, vector<1x8x128xf32>,
    %105 = arith.select %100, %97, %98 : vector<8x128xi1>, vector<8x128xf32>
    %c1_58 = arith.constant 1 : index
    %c0_59 = arith.constant 0 : index
    %c0_60 = arith.constant 0 : index
    %106 = vector.load %arg6[%c1_58, %c0_59, %c0_60] : memref<2x8x128xf32, #tpu.memory_space<vmem>>, vector<1x8x128xf32>
    %107 = vector.shape_cast %106 : vector<1x8x128xf32> to vector<8x128xf32>
    %108 = vector.shape_cast %105 : vector<8x128xf32> to vector<1x8x128xf32>
    tpu.vector_store %arg6[%c1_58, %c0_59, %c0_60], %108 {strides = array<i32>} : memref<2x8x128xf32, #tpu.memory_space<vmem>>, vector<1x8x128xf32>,
    return
  }
  func.func @transform_0(%arg0: i32) -> (i32, i32) {
    %c0_i32 = arith.constant 0 : i32
    %c0_i32_0 = arith.constant 0 : i32
    %c0_i32_1 = arith.constant 0 : i32
    return %c0_i32, %c0_i32_0 : i32, i32
  }
  func.func @transform_1(%arg0: i32) -> i32 {
    %c0_i32 = arith.constant 0 : i32
    %c0_i32_0 = arith.constant 0 : i32
    return %c0_i32 : i32
  }
  func.func @transform_2(%arg0: i32) -> (i32, i32) {
    %c0_i32 = arith.constant 0 : i32
    %c0_i32_0 = arith.constant 0 : i32
    %c0_i32_1 = arith.constant 0 : i32
    return %c0_i32, %c0_i32_0 : i32, i32
  }
  func.func @transform_3(%arg0: i32) -> i32 {
    %c0_i32 = arith.constant 0 : i32
    %c0_i32_0 = arith.constant 0 : i32
    return %c0_i32 : i32
  }
  func.func @transform_4(%arg0: i32) -> (i32, i32, i32) {
    %c0_i32 = arith.constant 0 : i32
    %c0_i32_0 = arith.constant 0 : i32
    %c0_i32_1 = arith.constant 0 : i32
    return %c0_i32, %arg0, %c0_i32_0 : i32, i32, i32
  }
  func.func @transform_5(%arg0: i32) -> (i32, i32, i32) {
    %c0_i32 = arith.constant 0 : i32
    %c0_i32_0 = arith.constant 0 : i32
    %c0_i32_1 = arith.constant 0 : i32
    return %c0_i32, %arg0, %c0_i32_0 : i32, i32, i32
  }
}

</mosaic_0001>

<llo_original>
// kernel: tpu_custom_call.1
$region0: #{tpu_custom_call.1}
  #allocation0 [shape = 'u32[]', space=smem, size = 0x4, offset = 0x4, fixed_abs, tag = 'smem constant byte address 0x4 - core index']
  #allocation1 [shape = 'u32[144,128]{1,0:T(1,128)}', space=vmem, size = 0x12000, scoped, tag = 'internal scratch']
  %s0 = inlined_call_operand.hbm [shape: f32[3,4], index: 0, kind: input, shape index: {}]
  %s1 = inlined_call_operand.vmem [shape: f32[3], index: 1, kind: input, shape index: {}]
  %s2 = inlined_call_operand.vmem [shape: f32[2,3], index: 2, kind: input, shape index: {}]
  %s3 = inlined_call_operand.vmem [shape: f32[2], index: 3, kind: input, shape index: {}]
  %s4 = inlined_call_operand.hbm [shape: f32[4,8,128], index: 4, kind: input, shape index: {}]
  %s5 = inlined_call_operand.hbm [shape: f32[2,8,128], index: 5, kind: output, shape index: {}]
  %s6 = sld [smem:[#allocation0]]
  $region50: #{tpu_custom_call.1} parent=0
    _
  %s8 = ssub.s32 1, %s6
  %s9 = scalar_select 0, %s8, %s6
  $region1: #{tpu_custom_call.1} parent=0
    #allocation2 [shape = 'u8[2048]{0}', space=smem, size = 0x800, scoped, tag = 'input window, operand 0, single buffered']
    #allocation3 [shape = 's32[1]{0}', space=sflag, size = 0x4, scoped, tag = 'scoped memory for tpu_custom_call.1']
    #allocation4 [shape = 's32[1]{0}', space=sflag, size = 0x4, scoped, tag = 'scoped memory for tpu_custom_call.1']
    #allocation5 [shape = 's32[1]{0}', space=sflag, size = 0x4, scoped, tag = 'scoped memory for tpu_custom_call.1']
    #allocation6 [shape = 's32[1]{0}', space=sflag, size = 0x4, scoped, tag = 'scoped memory for tpu_custom_call.1']
    #allocation7 [shape = 'u8[512]{0}', space=smem, size = 0x200, scoped, tag = 'input window, operand 1, single buffered']
    #allocation8 [shape = 'u8[1024]{0}', space=smem, size = 0x400, scoped, tag = 'input window, operand 2, single buffered']
    #allocation9 [shape = 's32[1]{0}', space=sflag, size = 0x4, scoped, tag = 'scoped memory for tpu_custom_call.1']
    #allocation10 [shape = 'u8[512]{0}', space=smem, size = 0x200, scoped, tag = 'input window, operand 3, single buffered']
    #allocation11 [shape = 'u8[16384]{0}', space=vmem, size = 0x4000, scoped, tag = 'input window, operand 4, single buffered']
    #allocation12 [shape = 'u8[8192]{0}', space=vmem, size = 0x2000, scoped, tag = 'output window, operand 0, single buffered']
    %10 = vsyncpa [#allocation5], 0
    %11 = vsyncpa [#allocation6], 0
    %12 = vsyncpa [#allocation9], 0
    %13 = vsyncpa [#allocation3], 0
    %14 = vsyncpa [#allocation4], 0
    // Predicated region
    $region2: #{tpu_custom_call.1} parent=1 // pred_check
      _
    $region3: #{tpu_custom_call.1} parent=1 // pred_check_branch
      %16 = sbr.rel (0) target = $region5
    $region4: #{tpu_custom_call.1} parent=1 // pred_region
      %s18 = ssub.s32 64, 64
      %19 = vsyncadd [#allocation5], %s18
      %22 = dma.hbm_to_smem %s0, 64, [#allocation2], [#allocation5]
    $region5: #{tpu_custom_call.1} parent=1 // pred_fallthru
      _
    // Predicated region
    $region6: #{tpu_custom_call.1} parent=1 // pred_check
      _
    $region7: #{tpu_custom_call.1} parent=1 // pred_check_branch
      %24 = sbr.rel (0) target = $region9
    $region8: #{tpu_custom_call.1} parent=1 // pred_region
      %s26 = ssub.s32 16, 16
      %27 = vsyncadd [#allocation6], %s26
      %s29 = sshll.u32 %s1, 4
      %s30 = int_to_ptr.vmem [resolvable:$true] %s29
      %32 = dma.vmem_to_smem %s30, 16, [#allocation7], [#allocation6]
    $region9: #{tpu_custom_call.1} parent=1 // pred_fallthru
      _
    // Predicated region
    $region10: #{tpu_custom_call.1} parent=1 // pred_check
      _
    $region11: #{tpu_custom_call.1} parent=1 // pred_check_branch
      %34 = sbr.rel (0) target = $region13
    $region12: #{tpu_custom_call.1} parent=1 // pred_region
      %s36 = ssub.s32 32, 32
      %37 = vsyncadd [#allocation9], %s36
      %s39 = sshll.u32 %s2, 4
      %s40 = int_to_ptr.vmem [resolvable:$true] %s39
      %42 = dma.vmem_to_smem %s40, 32, [#allocation8], [#allocation9]
    $region13: #{tpu_custom_call.1} parent=1 // pred_fallthru
      _
    // Predicated region
    $region14: #{tpu_custom_call.1} parent=1 // pred_check
      _
    $region15: #{tpu_custom_call.1} parent=1 // pred_check_branch
      %44 = sbr.rel (0) target = $region17
    $region16: #{tpu_custom_call.1} parent=1 // pred_region
      %s46 = ssub.s32 16, 16
      %47 = vsyncadd [#allocation9], %s46
      %s49 = sshll.u32 %s3, 4
      %s50 = int_to_ptr.vmem [resolvable:$true] %s49
      %52 = dma.vmem_to_smem %s50, 16, [#allocation10], [#allocation9]
    $region17: #{tpu_custom_call.1} parent=1 // pred_fallthru
      _
    // Predicated region
    $region18: #{tpu_custom_call.1} parent=1 // pred_check
      _
    $region19: #{tpu_custom_call.1} parent=1 // pred_check_branch
      %54 = sbr.rel (0) target = $region21
    $region20: #{tpu_custom_call.1} parent=1 // pred_region
      %s56 = ssub.s32 512, 512
      %57 = vsyncadd [#allocation3], %s56
      %s58 = sshll.u32 [#allocation11], 4
      %s59 = int_to_ptr.vmem [resolvable:$true] %s58
      %64 = dma.hbm_to_vmem [thread:$0]  %s4, 512, %s59, [#allocation3], 128, 128, 8
    $region21: #{tpu_custom_call.1} parent=1 // pred_fallthru
      _
    // Predicated region
    $region22: #{tpu_custom_call.1} parent=1 // pred_check
      _
    $region23: #{tpu_custom_call.1} parent=1 // pred_check_branch
      %66 = sbr.rel (0) target = $region25
    $region24: #{tpu_custom_call.1} parent=1 // pred_region
      %67 = dma.done [#allocation5], 64
    $region25: #{tpu_custom_call.1} parent=1 // pred_fallthru
      _
    // Predicated region
    $region26: #{tpu_custom_call.1} parent=1 // pred_check
      _
    $region27: #{tpu_custom_call.1} parent=1 // pred_check_branch
      %69 = sbr.rel (0) target = $region29
    $region28: #{tpu_custom_call.1} parent=1 // pred_region
      %70 = dma.done [#allocation6], 16
    $region29: #{tpu_custom_call.1} parent=1 // pred_fallthru
      _
    // Predicated region
    $region30: #{tpu_custom_call.1} parent=1 // pred_check
      _
    $region31: #{tpu_custom_call.1} parent=1 // pred_check_branch
      %72 = sbr.rel (0) target = $region33
    $region32: #{tpu_custom_call.1} parent=1 // pred_region
      %73 = dma.done [#allocation9], 32
    $region33: #{tpu_custom_call.1} parent=1 // pred_fallthru
      _
    // Predicated region
    $region34: #{tpu_custom_call.1} parent=1 // pred_check
      _
    $region35: #{tpu_custom_call.1} parent=1 // pred_check_branch
      %75 = sbr.rel (0) target = $region37
    $region36: #{tpu_custom_call.1} parent=1 // pred_region
      %76 = dma.done [#allocation9], 16
    $region37: #{tpu_custom_call.1} parent=1 // pred_fallthru
      _
    // Predicated region
    $region38: #{tpu_custom_call.1} parent=1 // pred_check
      _
    $region39: #{tpu_custom_call.1} parent=1 // pred_check_branch
      %78 = sbr.rel (0) target = $region41
    $region40: #{tpu_custom_call.1} parent=1 // pred_region
      %79 = dma.done [#allocation3], 512
    $region41: #{tpu_custom_call.1} parent=1 // pred_fallthru
      _
    %80 = sfence
    %v81 = vld [vmem:[#allocation11] sm:$0xff]
    %s82 = scalar_lea.vmem [#allocation11], 8
    %v83 = vld [vmem:[%s82] sm:$0xff]
    %s84 = scalar_lea.vmem [#allocation11], 16
    %v85 = vld [vmem:[%s84] sm:$0xff]
    %s86 = scalar_lea.vmem [#allocation11], 24
    %v87 = vld [vmem:[%s86] sm:$0xff]
    %s88 = sld [smem:[#allocation2]]
    %v89 = vstv %s88
    %v90 = vmul.f32 %v81, %v89
    %s91 = sld [smem:[#allocation2 + $0x1]]
    %v92 = vstv %s91
    %v93 = vmul.f32 %v83, %v92
    %v94 = vadd.f32 %v90, %v93
    %s95 = sld [smem:[#allocation2 + $0x2]]
    %v96 = vstv %s95
    %v97 = vmul.f32 %v85, %v96
    %v98 = vadd.f32 %v94, %v97
    %s99 = sld [smem:[#allocation2 + $0x3]]
    %v100 = vstv %s99
    %v101 = vmul.f32 %v87, %v100
    %v102 = vadd.f32 %v98, %v101
    %s103 = sld [smem:[#allocation7]]
    %v104 = vstv %s103
    %v105 = vadd.f32 %v102, %v104
    %v106 = vmax.f32 %v105, 0.0
    %s107 = sld [smem:[#allocation8 + $0x80]]
    %s108 = sld [smem:[#allocation8]]
    %s109 = ssub.f32 %s107, %s108
    %v110 = vstv %s109
    %v111 = vmul.f32 %v106, %v110
    %s112 = sld [smem:[#allocation2 + $0x80]]
    %v113 = vstv %s112
    %v114 = vmul.f32 %v81, %v113
    %s115 = sld [smem:[#allocation2 + $0x81]]
    %v116 = vstv %s115
    %v117 = vmul.f32 %v83, %v116
    %v118 = vadd.f32 %v114, %v117
    %s119 = sld [smem:[#allocation2 + $0x82]]
    %v120 = vstv %s119
    %v121 = vmul.f32 %v85, %v120
    %v122 = vadd.f32 %v118, %v121
    %s123 = sld [smem:[#allocation2 + $0x83]]
    %v124 = vstv %s123
    %v125 = vmul.f32 %v87, %v124
    %v126 = vadd.f32 %v122, %v125
    %s127 = sld [smem:[#allocation7 + $0x1]]
    %v128 = vstv %s127
    %v129 = vadd.f32 %v126, %v128
    %v130 = vmax.f32 %v129, 0.0
    %s131 = sld [smem:[#allocation8 + $0x81]]
    %s132 = sld [smem:[#allocation8 + $0x1]]
    %s133 = ssub.f32 %s131, %s132
    %v134 = vstv %s133
    %v135 = vmul.f32 %v130, %v134
    %v136 = vadd.f32 %v111, %v135
    %s137 = sld [smem:[#allocation2 + $0x100]]
    %v138 = vstv %s137
    %v139 = vmul.f32 %v81, %v138
    %s140 = sld [smem:[#allocation2 + $0x101]]
    %v141 = vstv %s140
    %v142 = vmul.f32 %v83, %v141
    %v143 = vadd.f32 %v139, %v142
    %s144 = sld [smem:[#allocation2 + $0x102]]
    %v145 = vstv %s144
    %v146 = vmul.f32 %v85, %v145
    %v147 = vadd.f32 %v143, %v146
    %s148 = sld [smem:[#allocation2 + $0x103]]
    %v149 = vstv %s148
    %v150 = vmul.f32 %v87, %v149
    %v151 = vadd.f32 %v147, %v150
    %s152 = sld [smem:[#allocation7 + $0x2]]
    %v153 = vstv %s152
    %v154 = vadd.f32 %v151, %v153
    %v155 = vmax.f32 %v154, 0.0
    %s156 = sld [smem:[#allocation8 + $0x82]]
    %s157 = sld [smem:[#allocation8 + $0x2]]
    %s158 = ssub.f32 %s156, %s157
    %v159 = vstv %s158
    %v160 = vmul.f32 %v155, %v159
    %v161 = vadd.f32 %v136, %v160
    %s162 = sld [smem:[#allocation10 + $0x1]]
    %s163 = sld [smem:[#allocation10]]
    %s164 = ssub.f32 %s162, %s163
    %v165 = vstv %s164
    %v166 = vadd.f32 %v161, %v165
    %v167 = vand.u32 2147483647, %v166
    %v168 = vsub.f32 0.0, %v167
    %v169 = vmul.f32 %v168, 1.442695
    %v170 = vpow.pop %v169
    %v171 = vadd.f32 %v170, 1.0
    %v172 = vrcp.pop %v171
    %v173 = vmul.f32 1.0, %v172
    %v174 = vmul.f32 %v170, %v173
    %vm175 = vcmp.ge.f32.partialorder %v166, 0.0
    %v176 = vsel %vm175, %v174, %v173
    %177 = vst [vmem:[#allocation12] sm:$0xff] %v176
    %v178 = vsel %vm175, %v173, %v174
    %s179 = scalar_lea.vmem [#allocation12], 8
    %180 = vst [vmem:[%s179] sm:$0xff] %v178
    // Predicated region
    $region42: #{tpu_custom_call.1} parent=1 // pred_check
      _
    $region43: #{tpu_custom_call.1} parent=1 // pred_check_branch
      %182 = sbr.rel (0) target = $region45
    $region44: #{tpu_custom_call.1} parent=1 // pred_region
      %s184 = ssub.s32 256, 256
      %185 = vsyncadd [#allocation4], %s184
      %s186 = sshll.u32 [#allocation12], 4
      %s187 = int_to_ptr.vmem [resolvable:$true] %s186
      %192 = dma.vmem_to_hbm [thread:$0]  %s187, 256, %s5, [#allocation4], 128, 128, 8
    $region45: #{tpu_custom_call.1} parent=1 // pred_fallthru
      _
    // Predicated region
    $region46: #{tpu_custom_call.1} parent=1 // pred_check
      _
    $region47: #{tpu_custom_call.1} parent=1 // pred_check_branch
      %194 = sbr.rel (0) target = $region49
    $region48: #{tpu_custom_call.1} parent=1 // pred_region
      %195 = dma.done [#allocation4], 256
    $region49: #{tpu_custom_call.1} parent=1 // pred_fallthru
      _
    %196 = vsyncpa [#allocation3], 1
    %197 = vsyncpa [#allocation4], 1
    %198 = vsyncpa [#allocation5], 1
    %199 = vsyncpa [#allocation6], 1
    %200 = vsyncpa [#allocation9], 1

</llo_original>
